<compile_context>
chip_gen: v5e
topology: v5e:2x2
jax: 0.10.0
libtpu: 0.0.40
codegen_flags: <defaults>
</compile_context>

<pallas_src>
import jax
import jax.numpy as jnp
from jax.experimental import pallas as pl
from jax.experimental.pallas import tpu as pltpu


def _outconv_kernel(w_ref, b_ref, x_ref, o_ref):
    """One (1, C_in, s_tile) spatial block of the pointwise conv.

    w_ref: SMEM (C_out, C_in) f32   -- scalar reads
    b_ref: SMEM (C_out,)      f32   -- scalar reads
    x_ref: VMEM (1, C_in,  s_tile)
    o_ref: VMEM (1, C_out, s_tile)  -- lane-dense (s_tile % 128 == 0)
    """
    c_out, c_in = w_ref.shape
    x = x_ref[0].astype(jnp.float32)            # (C_in, s_tile), f32 accumulate
    rows = []
    for o in range(c_out):                      # static unroll: channels are tiny
        acc = b_ref[o] + w_ref[o, 0] * x[0:1, :]
        for c in range(1, c_in):
            acc = acc + w_ref[o, c] * x[c:c + 1, :]
        rows.append(acc)                        # (1, s_tile) f32
    out = jnp.concatenate(rows, axis=0)         # (C_out, s_tile)
    o_ref[0] = out.astype(o_ref.dtype)


def _round_up(x, m):
    return ((x + m - 1) // m) * m


def outconv_forward(x, weight, bias, *, s_tile_target=32768):
    """1x1x1 Conv3d (pointwise) forward.

    x:      (N, C_in, D, H, W)
    weight: (C_out, C_in, 1, 1, 1)
    bias:   (C_out,)
    returns (N, C_out, D, H, W)
    """
    N, C_in, D, H, W = x.shape
    C_out = weight.shape[0]
    S = D * H * W

    # Metadata-only reshapes (contiguous NCDHW) -- no transposes, no extra HBM traffic.
    x3 = x.reshape(N, C_in, S)
    w2 = weight.reshape(C_out, C_in).astype(jnp.float32)
    b1 = bias.reshape(C_out).astype(jnp.float32)

    # Lane-dense spatial tile: multiple of 128 lanes, as large as sensible.
    s_tile = min(s_tile_target, _round_up(S, 128))
    S_pad = _round_up(S, s_tile)
    if S_pad != S:
        # Pad once in the wrapper; padded columns are sliced off below.
        x3 = jnp.pad(x3, ((0, 0), (0, 0), (0, S_pad - S)))

    grid = (N, S_pad // s_tile)

    cost = pl.CostEstimate(
        flops=2 * N * S * C_in * C_out,
        transcendentals=0,
        bytes_accessed=N * S * (C_in + C_out) * x.dtype.itemsize
        + (C_out * C_in + C_out) * 4,
    )

    y3 = pl.pallas_call(
        _outconv_kernel,
        out_shape=jax.ShapeDtypeStruct((N, C_out, S_pad), x.dtype),
        grid_spec=pltpu.PrefetchScalarGridSpec(
            num_scalar_prefetch=0,
            grid=grid,
            in_specs=[
                pl.BlockSpec(memory_space=pltpu.MemorySpace.SMEM),      # weight
                pl.BlockSpec(memory_space=pltpu.MemorySpace.SMEM),      # bias
                pl.BlockSpec((1, C_in, s_tile), lambda n, s: (n, 0, s)),
            ],
            out_specs=pl.BlockSpec((1, C_out, s_tile), lambda n, s: (n, 0, s)),
        ),
        compiler_params=pltpu.CompilerParams(
            dimension_semantics=("parallel", "parallel")),
        cost_estimate=cost,
    )(w2, b1, x3)

    if S_pad != S:
        y3 = y3[:, :, :S]
    return y3.reshape(N, C_out, D, H, W)


if __name__ == "__main__":
    key = jax.random.PRNGKey(0)
    k_x, k_w, k_b = jax.random.split(key, 3)

    N, C_in, C_out, D, H, W = 2, 4, 3, 4, 8, 8

    x = jax.random.normal(k_x, (N, C_in, D, H, W), dtype=jnp.float32)
    # Deterministic synthetic init matching Conv3d(in_ch, out_ch, 1) param shapes.
    fan_in = C_in  # kernel 1x1x1
    bound = 1.0 / (fan_in ** 0.5)
    weight = jax.random.uniform(k_w, (C_out, C_in, 1, 1, 1),
                                minval=-bound, maxval=bound, dtype=jnp.float32)
    bias = jax.random.uniform(k_b, (C_out,),
                              minval=-bound, maxval=bound, dtype=jnp.float32)

    y = outconv_forward(x, weight, bias)
    jax.block_until_ready(y)

    # Reference check against plain-JAX pointwise conv.
    ref = jnp.einsum('ncdhw,oc->nodhw', x, weight.reshape(C_out, C_in)) \
        + bias.reshape(1, C_out, 1, 1, 1)
    assert y.shape == (N, C_out, D, H, W)
    assert jnp.allclose(y, ref, atol=1e-5, rtol=1e-5)

    print("KERNEL_OK")
</pallas_src>

<mosaic_0001>
module attributes {stable_mosaic.version = 11 : i64} {
  func.func @_outconv_kernel(%arg0: i32, %arg1: i32, %arg2: memref<3x4xf32, #tpu.memory_space<smem>>, %arg3: memref<3xf32, #tpu.memory_space<smem>>, %arg4: memref<1x4x256xf32, #tpu.memory_space<vmem>>, %arg5: memref<1x3x256xf32, #tpu.memory_space<vmem>>) attributes {dimension_semantics = [#tpu.dimension_semantics<parallel>, #tpu.dimension_semantics<parallel>], iteration_bounds = array<i64: 2, 1>, scalar_prefetch = 0 : i64, scratch_operands = 0 : i64, tpu.core_type = #tpu.core_type<tc>, window_params = [{transform_indices = @transform_0, window_bounds = array<i64: 3, 4>}, {transform_indices = @transform_1, window_bounds = array<i64: 3>}, {transform_indices = @transform_2, window_bounds = array<i64: 1, 4, 256>}, {transform_indices = @transform_3, window_bounds = array<i64: 1, 3, 256>}]} {
    %c0 = arith.constant 0 : index
    %c0_0 = arith.constant 0 : index
    %c0_1 = arith.constant 0 : index
    %0 = vector.load %arg4[%c0, %c0_0, %c0_1] : memref<1x4x256xf32, #tpu.memory_space<vmem>>, vector<1x4x256xf32>
    %1 = vector.shape_cast %0 : vector<1x4x256xf32> to vector<4x256xf32>
    %c0_2 = arith.constant 0 : index
    %2 = memref.load %arg3[%c0_2] : memref<3xf32, #tpu.memory_space<smem>>
    %c0_3 = arith.constant 0 : index
    %c0_4 = arith.constant 0 : index
    %3 = memref.load %arg2[%c0_3, %c0_4] : memref<3x4xf32, #tpu.memory_space<smem>>
    %4 = vector.extract_strided_slice %1 {offsets = [0, 0], sizes = [1, 256], strides = [1, 1]} : vector<4x256xf32> to vector<1x256xf32>
    %5 = vector.broadcast %3 : f32 to vector<1x256xf32>
    %6 = arith.mulf %5, %4 : vector<1x256xf32>
    %7 = vector.broadcast %2 : f32 to vector<1x256xf32>
    %8 = arith.addf %7, %6 : vector<1x256xf32>
    %c0_5 = arith.constant 0 : index
    %c1 = arith.constant 1 : index
    %9 = memref.load %arg2[%c0_5, %c1] : memref<3x4xf32, #tpu.memory_space<smem>>
    %10 = vector.extract_strided_slice %1 {offsets = [1, 0], sizes = [1, 256], strides = [1, 1]} : vector<4x256xf32> to vector<1x256xf32>
    %11 = vector.broadcast %9 : f32 to vector<1x256xf32>
    %12 = arith.mulf %11, %10 : vector<1x256xf32>
    %13 = arith.addf %8, %12 : vector<1x256xf32>
    %c0_6 = arith.constant 0 : index
    %c2 = arith.constant 2 : index
    %14 = memref.load %arg2[%c0_6, %c2] : memref<3x4xf32, #tpu.memory_space<smem>>
    %15 = vector.extract_strided_slice %1 {offsets = [2, 0], sizes = [1, 256], strides = [1, 1]} : vector<4x256xf32> to vector<1x256xf32>
    %16 = vector.broadcast %14 : f32 to vector<1x256xf32>
    %17 = arith.mulf %16, %15 : vector<1x256xf32>
    %18 = arith.addf %13, %17 : vector<1x256xf32>
    %c0_7 = arith.constant 0 : index
    %c3 = arith.constant 3 : index
    %19 = memref.load %arg2[%c0_7, %c3] : memref<3x4xf32, #tpu.memory_space<smem>>
    %20 = vector.extract_strided_slice %1 {offsets = [3, 0], sizes = [1, 256], strides = [1, 1]} : vector<4x256xf32> to vector<1x256xf32>
    %21 = vector.broadcast %19 : f32 to vector<1x256xf32>
    %22 = arith.mulf %21, %20 : vector<1x256xf32>
    %23 = arith.addf %18, %22 : vector<1x256xf32>
    %c1_8 = arith.constant 1 : index
    %24 = memref.load %arg3[%c1_8] : memref<3xf32, #tpu.memory_space<smem>>
    %c1_9 = arith.constant 1 : index
    %c0_10 = arith.constant 0 : index
    %25 = memref.load %arg2[%c1_9, %c0_10] : memref<3x4xf32, #tpu.memory_space<smem>>
    %26 = vector.extract_strided_slice %1 {offsets = [0, 0], sizes = [1, 256], strides = [1, 1]} : vector<4x256xf32> to vector<1x256xf32>
    %27 = vector.broadcast %25 : f32 to vector<1x256xf32>
    %28 = arith.mulf %27, %26 : vector<1x256xf32>
    %29 = vector.broadcast %24 : f32 to vector<1x256xf32>
    %30 = arith.addf %29, %28 : vector<1x256xf32>
    %c1_11 = arith.constant 1 : index
    %c1_12 = arith.constant 1 : index
    %31 = memref.load %arg2[%c1_11, %c1_12] : memref<3x4xf32, #tpu.memory_space<smem>>
    %32 = vector.extract_strided_slice %1 {offsets = [1, 0], sizes = [1, 256], strides = [1, 1]} : vector<4x256xf32> to vector<1x256xf32>
    %33 = vector.broadcast %31 : f32 to vector<1x256xf32>
    %34 = arith.mulf %33, %32 : vector<1x256xf32>
    %35 = arith.addf %30, %34 : vector<1x256xf32>
    %c1_13 = arith.constant 1 : index
    %c2_14 = arith.constant 2 : index
    %36 = memref.load %arg2[%c1_13, %c2_14] : memref<3x4xf32, #tpu.memory_space<smem>>
    %37 = vector.extract_strided_slice %1 {offsets = [2, 0], sizes = [1, 256], strides = [1, 1]} : vector<4x256xf32> to vector<1x256xf32>
    %38 = vector.broadcast %36 : f32 to vector<1x256xf32>
    %39 = arith.mulf %38, %37 : vector<1x256xf32>
    %40 = arith.addf %35, %39 : vector<1x256xf32>
    %c1_15 = arith.constant 1 : index
    %c3_16 = arith.constant 3 : index
    %41 = memref.load %arg2[%c1_15, %c3_16] : memref<3x4xf32, #tpu.memory_space<smem>>
    %42 = vector.extract_strided_slice %1 {offsets = [3, 0], sizes = [1, 256], strides = [1, 1]} : vector<4x256xf32> to vector<1x256xf32>
    %43 = vector.broadcast %41 : f32 to vector<1x256xf32>
    %44 = arith.mulf %43, %42 : vector<1x256xf32>
    %45 = arith.addf %40, %44 : vector<1x256xf32>
    %c2_17 = arith.constant 2 : index
    %46 = memref.load %arg3[%c2_17] : memref<3xf32, #tpu.memory_space<smem>>
    %c2_18 = arith.constant 2 : index
    %c0_19 = arith.constant 0 : index
    %47 = memref.load %arg2[%c2_18, %c0_19] : memref<3x4xf32, #tpu.memory_space<smem>>
    %48 = vector.extract_strided_slice %1 {offsets = [0, 0], sizes = [1, 256], strides = [1, 1]} : vector<4x256xf32> to vector<1x256xf32>
    %49 = vector.broadcast %47 : f32 to vector<1x256xf32>
    %50 = arith.mulf %49, %48 : vector<1x256xf32>
    %51 = vector.broadcast %46 : f32 to vector<1x256xf32>
    %52 = arith.addf %51, %50 : vector<1x256xf32>
    %c2_20 = arith.constant 2 : index
    %c1_21 = arith.constant 1 : index
    %53 = memref.load %arg2[%c2_20, %c1_21] : memref<3x4xf32, #tpu.memory_space<smem>>
    %54 = vector.extract_strided_slice %1 {offsets = [1, 0], sizes = [1, 256], strides = [1, 1]} : vector<4x256xf32> to vector<1x256xf32>
    %55 = vector.broadcast %53 : f32 to vector<1x256xf32>
    %56 = arith.mulf %55, %54 : vector<1x256xf32>
    %57 = arith.addf %52, %56 : vector<1x256xf32>
    %c2_22 = arith.constant 2 : index
    %c2_23 = arith.constant 2 : index
    %58 = memref.load %arg2[%c2_22, %c2_23] : memref<3x4xf32, #tpu.memory_space<smem>>
    %59 = vector.extract_strided_slice %1 {offsets = [2, 0], sizes = [1, 256], strides = [1, 1]} : vector<4x256xf32> to vector<1x256xf32>
    %60 = vector.broadcast %58 : f32 to vector<1x256xf32>
    %61 = arith.mulf %60, %59 : vector<1x256xf32>
    %62 = arith.addf %57, %61 : vector<1x256xf32>
    %c2_24 = arith.constant 2 : index
    %c3_25 = arith.constant 3 : index
    %63 = memref.load %arg2[%c2_24, %c3_25] : memref<3x4xf32, #tpu.memory_space<smem>>
    %64 = vector.extract_strided_slice %1 {offsets = [3, 0], sizes = [1, 256], strides = [1, 1]} : vector<4x256xf32> to vector<1x256xf32>
    %65 = vector.broadcast %63 : f32 to vector<1x256xf32>
    %66 = arith.mulf %65, %64 : vector<1x256xf32>
    %67 = arith.addf %62, %66 : vector<1x256xf32>
    %68 = tpu.concatenate %23, %45, %67 in 0 : vector<1x256xf32>, vector<1x256xf32>, vector<1x256xf32> -> vector<3x256xf32>
    %c0_26 = arith.constant 0 : index
    %c0_27 = arith.constant 0 : index
    %c0_28 = arith.constant 0 : index
    %69 = vector.load %arg5[%c0_26, %c0_27, %c0_28] : memref<1x3x256xf32, #tpu.memory_space<vmem>>, vector<1x3x256xf32>
    %70 = vector.shape_cast %69 : vector<1x3x256xf32> to vector<3x256xf32>
    %71 = vector.shape_cast %68 : vector<3x256xf32> to vector<1x3x256xf32>
    tpu.vector_store %arg5[%c0_26, %c0_27, %c0_28], %71 {strides = array<i32>} : memref<1x3x256xf32, #tpu.memory_space<vmem>>, vector<1x3x256xf32>,
    return
  }
  func.func @transform_0(%arg0: i32, %arg1: i32) -> (i32, i32) {
    %c0_i32 = arith.constant 0 : i32
    %c0_i32_0 = arith.constant 0 : i32
    %c0_i32_1 = arith.constant 0 : i32
    return %c0_i32, %c0_i32_0 : i32, i32
  }
  func.func @transform_1(%arg0: i32, %arg1: i32) -> i32 {
    %c0_i32 = arith.constant 0 : i32
    %c0_i32_0 = arith.constant 0 : i32
    return %c0_i32 : i32
  }
  func.func @transform_2(%arg0: i32, %arg1: i32) -> (i32, i32, i32) {
    %c0_i32 = arith.constant 0 : i32
    %c0_i32_0 = arith.constant 0 : i32
    return %arg0, %c0_i32, %arg1 : i32, i32, i32
  }
  func.func @transform_3(%arg0: i32, %arg1: i32) -> (i32, i32, i32) {
    %c0_i32 = arith.constant 0 : i32
    %c0_i32_0 = arith.constant 0 : i32
    return %arg0, %c0_i32, %arg1 : i32, i32, i32
  }
}

</mosaic_0001>

<llo_original>
// kernel: tpu_custom_call.1
$region0: #{tpu_custom_call.1}
  #allocation0 [shape = 'u32[]', space=smem, size = 0x4, offset = 0x4, fixed_abs, tag = 'smem constant byte address 0x4 - core index']
  #allocation1 [shape = 'u32[72,128]{1,0:T(1,128)}', space=vmem, size = 0x9000, scoped, tag = 'internal scratch']
  %s0 = inlined_call_operand.hbm [shape: f32[3,4], index: 0, kind: input, shape index: {}]
  %s1 = inlined_call_operand.hbm [shape: f32[3], index: 1, kind: input, shape index: {}]
  %s2 = inlined_call_operand.hbm [shape: f32[2,4,256], index: 2, kind: input, shape index: {}]
  %s3 = inlined_call_operand.vmem [shape: f32[2,3,256], index: 3, kind: output, shape index: {}]
  %s4 = sld [smem:[#allocation0]]
  $region57: #{tpu_custom_call.1} parent=0
    _
  %s6 = ssub.s32 1, %s4
  %s7 = scalar_select 0, %s6, %s4
  $region1: #{tpu_custom_call.1} parent=0
    #allocation2 [shape = 'u8[2048]{0}', space=smem, size = 0x800, scoped, tag = 'input window, operand 0, single buffered']
    #allocation3 [shape = 's32[2]{0}', space=sflag, size = 0x8, scoped, tag = 'scoped memory for tpu_custom_call.1']
    #allocation4 [shape = 's32[2]{0}', space=sflag, size = 0x8, scoped, tag = 'scoped memory for tpu_custom_call.1']
    #allocation5 [shape = 'u8[512]{0}', space=smem, size = 0x200, scoped, tag = 'input window, operand 1, single buffered']
    #allocation6 [shape = 's32[1]{0}', space=sflag, size = 0x4, scoped, tag = 'scoped memory for tpu_custom_call.1']
    #allocation7 [shape = 'u8[8192]{0}', space=vmem, size = 0x2000, scoped, tag = 'input window, operand 2']
    %8 = vsyncpa [#allocation4], 0
    %9 = vsyncpa [#allocation6], 0
    %10 = vsyncpa [#allocation3], 0
    %s11 = scalar_lea.sflag [#allocation3], 1
    %12 = vsyncpa %s11, 0
    loop: start=0, step=1, limit=4
    $region2: #{tpu_custom_call.1} parent=1 // loop_pre_header
      _
    $region3: #{tpu_custom_call.1} parent=1 // loop_header
      %s14 = sphi 0, %s18
      %p15 = scmp.ge.s32.totalorder %s14, 4
      %s21 = sphi 0, %s33
      %s22 = sphi 0, %s29
      %s23 = sphi 0, %s21
      %s24 = sphi 0, %s22
      %s25 = sphi 0, %s23
      %s26 = sphi 0, %s24
      %s34 = sphi 0, %s34
      %s36 = sphi 0, %s34
      %s37 = sphi 0, %s36
      %s51 = sphi 0, %s37
      %s55 = sphi 0, %s55
      %s57 = sphi 0, %s55
      %s58 = sphi 0, %s57
      %s72 = sphi 0, %s58
      %s80 = sphi 0, %s82
      %s83 = sphi 0, %s80
      %s84 = sphi 0, %s83
      %s100 = sphi 0, %s84
      %s108 = sphi 0, %s110
      %s111 = sphi 0, %s108
      %s112 = sphi 0, %s111
      %s128 = sphi 0, %s112
    $region4: #{tpu_custom_call.1} parent=1 // loop_header_branch
      %17 = sbr.rel (%p15) target = $region8
    $region5: #{tpu_custom_call.1} parent=1 // loop_body
      %s19 = ssub.s32 %s14, 1
      %s20 = ssub.s32 %s14, 2
      %s27 = sadd.s32 1, %s22
      %p28 = scmp.ge.s32.totalorder %s27, 1
      %s29 = scalar_select %p28, 0, %s27
      %s30 = sadd.s32 1, %s21
      %s31 = scalar_select %p28, %s30, %s21
      %p32 = scmp.ge.s32.totalorder %s31, 2
      %s33 = scalar_select %p32, 0, %s31
      %s35 = sadd.s32 %s34, 1
      %p38 = scmp.eq.s32.totalorder %s14, 1
      %p39 = scmp.ne.s32.totalorder %s34, %s36
      %p40 = scmp.eq.s32.totalorder %s14, 0
      %p41 = por %p39, %p40
      %p42 = scmp.ne.s32.totalorder %s34, %s36
      %p43 = scmp.eq.s32.totalorder %s19, 1
      %p44 = por %p42, %p43
      %p45 = scmp.ne.s32.totalorder %s36, %s37
      %p46 = scmp.eq.s32.totalorder %s19, 0
      %p47 = por %p45, %p46
      %p48 = scmp.ne.s32.totalorder %s36, %s37
      %p49 = scmp.eq.s32.totalorder %s20, 1
      %p50 = por %p48, %p49
      %p52 = scmp.ne.s32.totalorder %s37, %s51
      %p53 = scmp.eq.s32.totalorder %s20, 0
      %p54 = por %p52, %p53
      %s56 = sadd.s32 %s55, 1
      %p59 = scmp.eq.s32.totalorder %s14, 1
      %p60 = scmp.ne.s32.totalorder %s55, %s57
      %p61 = scmp.eq.s32.totalorder %s14, 0
      %p62 = por %p60, %p61
      %p63 = scmp.ne.s32.totalorder %s55, %s57
      %p64 = scmp.eq.s32.totalorder %s19, 1
      %p65 = por %p63, %p64
      %p66 = scmp.ne.s32.totalorder %s57, %s58
      %p67 = scmp.eq.s32.totalorder %s19, 0
      %p68 = por %p66, %p67
      %p69 = scmp.ne.s32.totalorder %s57, %s58
      %p70 = scmp.eq.s32.totalorder %s20, 1
      %p71 = por %p69, %p70
      %p73 = scmp.ne.s32.totalorder %s58, %s72
      %p74 = scmp.eq.s32.totalorder %s20, 0
      %p75 = por %p73, %p74
      %s76 = ssub.s32 %s21, %s33
      %s77 = ssub.s32 %s22, %s29
      %s78 = sor.u32 %s76, %s77
      %p79 = scmp.eq.s32.totalorder %s78, 0
      %s81 = sadd.s32 %s80, 1
      %s82 = scalar_select %p79, %s80, %s81
      %p85 = pneg %p79
      %p86 = scmp.eq.s32.totalorder %s14, 1
      %p87 = por %p85, %p86
      %p88 = scmp.ne.s32.totalorder %s80, %s83
      %p89 = scmp.eq.s32.totalorder %s14, 0
      %p90 = por %p88, %p89
      %p91 = scmp.ne.s32.totalorder %s80, %s83
      %p92 = scmp.eq.s32.totalorder %s19, 1
      %p93 = por %p91, %p92
      %p94 = scmp.ne.s32.totalorder %s83, %s84
      %p95 = scmp.eq.s32.totalorder %s19, 0
      %p96 = por %p94, %p95
      %p97 = scmp.ne.s32.totalorder %s83, %s84
      %p98 = scmp.eq.s32.totalorder %s20, 1
      %p99 = por %p97, %p98
      %p101 = scmp.ne.s32.totalorder %s84, %s100
      %p102 = scmp.eq.s32.totalorder %s20, 0
      %p103 = por %p101, %p102
      %s104 = ssub.s32 %s21, %s33
      %s105 = ssub.s32 %s22, %s29
      %s106 = sor.u32 %s104, %s105
      %p107 = scmp.eq.s32.totalorder %s106, 0
      %s109 = sadd.s32 %s108, 1
      %s110 = scalar_select %p107, %s108, %s109
      %p113 = pneg %p107
      %p114 = scmp.eq.s32.totalorder %s14, 1
      %p115 = por %p113, %p114
      %p116 = scmp.ne.s32.totalorder %s108, %s111
      %p117 = scmp.eq.s32.totalorder %s14, 0
      %p118 = por %p116, %p117
      %p119 = scmp.ne.s32.totalorder %s108, %s111
      %p120 = scmp.eq.s32.totalorder %s19, 1
      %p121 = por %p119, %p120
      %p122 = scmp.ne.s32.totalorder %s111, %s112
      %p123 = scmp.eq.s32.totalorder %s19, 0
      %p124 = por %p122, %p123
      %p125 = scmp.ne.s32.totalorder %s111, %s112
      %p126 = scmp.eq.s32.totalorder %s20, 1
      %p127 = por %p125, %p126
      %p129 = scmp.ne.s32.totalorder %s112, %s128
      %p130 = scmp.eq.s32.totalorder %s20, 0
      %p131 = por %p129, %p130
      %p132 = scmp.le.s32.totalorder 1, %s14
      %p133 = scmp.lt.s32.totalorder %s14, 3
      %p134 = pnand %p132, %p133
      %p135 = pneg %p134
      // Predicated region
      $region9: #{tpu_custom_call.1} parent=5 // pred_check
        _
      $region10: #{tpu_custom_call.1} parent=5 // pred_check_branch
        %137 = sbr.rel (%p134) target = $region12
      $region11: #{tpu_custom_call.1} parent=5 // pred_region
        %s138 = ssub.s32 %s14, 1
        // Predicated region
        $region13: #{tpu_custom_call.1} parent=11 // pred_check
          %p139 = pneg %p47
        $region14: #{tpu_custom_call.1} parent=11 // pred_check_branch
          %141 = sbr.rel (%p139) target = $region16
        $region15: #{tpu_custom_call.1} parent=11 // pred_region
          %143 = vsyncadd [#allocation4], 0
          %s145 = sshll.u32 %s0, 4
          %s146 = int_to_ptr.hbm [resolvable:$true] %s145
          %148 = dma.hbm_to_smem %s146, 64, [#allocation2], [#allocation4]
        $region16: #{tpu_custom_call.1} parent=11 // pred_fallthru
          _
        // Predicated region
        $region17: #{tpu_custom_call.1} parent=11 // pred_check
          %p149 = pneg %p68
        $region18: #{tpu_custom_call.1} parent=11 // pred_check_branch
          %151 = sbr.rel (%p149) target = $region20
        $region19: #{tpu_custom_call.1} parent=11 // pred_region
          %153 = vsyncadd [#allocation6], 0
          %s155 = sshll.u32 %s1, 4
          %s156 = int_to_ptr.hbm [resolvable:$true] %s155
          %158 = dma.hbm_to_smem %s156, 16, [#allocation5], [#allocation6]
        $region20: #{tpu_custom_call.1} parent=11 // pred_fallthru
          _
      $region12: #{tpu_custom_call.1} parent=5 // pred_fallthru
        _
      %p159 = scmp.lt.s32.totalorder %s14, 2
      // Predicated region
      $region21: #{tpu_custom_call.1} parent=5 // pred_check
        %p160 = pneg %p159
      $region22: #{tpu_custom_call.1} parent=5 // pred_check_branch
        %162 = sbr.rel (%p160) target = $region24
      $region23: #{tpu_custom_call.1} parent=5 // pred_region
        // Predicated region
        $region25: #{tpu_custom_call.1} parent=23 // pred_check
          %p163 = pneg %p90
        $region26: #{tpu_custom_call.1} parent=23 // pred_check_branch
          %165 = sbr.rel (%p163) target = $region28
        $region27: #{tpu_custom_call.1} parent=23 // pred_region
          %s166 = sand.u32 %s80, 1
          %s167 = scalar_lea.sflag [#allocation3], %s166
          %s168 = sand.u32 %s80, 1
          %s169 = smul.addr %s168, 8
          %s170 = scalar_lea.vmem [#allocation7], %s169
          %s171 = smul.u32 2, %s22
          %173 = vsyncadd %s167, 0
          %s174 = smul.addr %s21, 2
          %s175 = sadd.s32 %s171, %s174
          %s176 = smul.addr %s175, 4
          %s177 = scalar_lea.hbm %s2, %s176
          %s179 = sshll.u32 %s177, 4
          %s180 = int_to_ptr.hbm [resolvable:$true] %s179
          %s181 = sshll.u32 %s170, 4
          %s182 = int_to_ptr.vmem [resolvable:$true] %s181
          %184 = dma.hbm_to_vmem [thread:$0]  %s180, 128, %s182, %s167
        $region28: #{tpu_custom_call.1} parent=23 // pred_fallthru
          _
      $region24: #{tpu_custom_call.1} parent=5 // pred_fallthru
        _
      %p185 = scmp.le.s32.totalorder 1, %s14
      %p186 = scmp.lt.s32.totalorder %s14, 3
      %p187 = pnand %p185, %p186
      %p188 = pneg %p187
      // Predicated region
      $region29: #{tpu_custom_call.1} parent=5 // pred_check
        _
      $region30: #{tpu_custom_call.1} parent=5 // pred_check_branch
        %190 = sbr.rel (%p187) target = $region32
      $region31: #{tpu_custom_call.1} parent=5 // pred_region
        %s191 = ssub.s32 %s14, 1
        // Predicated region
        $region33: #{tpu_custom_call.1} parent=31 // pred_check
          %p192 = pneg %p47
        $region34: #{tpu_custom_call.1} parent=31 // pred_check_branch
          %194 = sbr.rel (%p192) target = $region36
        $region35: #{tpu_custom_call.1} parent=31 // pred_region
          %196 = dma.done [#allocation4], 64
        $region36: #{tpu_custom_call.1} parent=31 // pred_fallthru
          _
        // Predicated region
        $region37: #{tpu_custom_call.1} parent=31 // pred_check
          %p197 = pneg %p68
        $region38: #{tpu_custom_call.1} parent=31 // pred_check_branch
          %199 = sbr.rel (%p197) target = $region40
        $region39: #{tpu_custom_call.1} parent=31 // pred_region
          %201 = dma.done [#allocation6], 16
        $region40: #{tpu_custom_call.1} parent=31 // pred_fallthru
          _
        %s202 = sand.u32 %s83, 1
        %s203 = scalar_lea.sflag [#allocation3], %s202
        %s204 = sand.u32 %s83, 1
        %s205 = smul.addr %s204, 8
        %s206 = scalar_lea.vmem [#allocation7], %s205
        // Predicated region
        $region41: #{tpu_custom_call.1} parent=31 // pred_check
          %p207 = pneg %p96
        $region42: #{tpu_custom_call.1} parent=31 // pred_check_branch
          %209 = sbr.rel (%p207) target = $region44
        $region43: #{tpu_custom_call.1} parent=31 // pred_region
          %211 = dma.done %s203, 128
        $region44: #{tpu_custom_call.1} parent=31 // pred_fallthru
          _
        %212 = sfence
        %p213 = pneg %p47
        %p214 = pneg %p44
        %p215 = pneg %p68
        %p216 = pneg %p65
        %s217 = sand.u32 %s83, 1
        %s218 = scalar_lea.sflag [#allocation3], %s217
        %s219 = sand.u32 %s83, 1
        %s220 = smul.addr %s219, 8
        %s221 = scalar_lea.vmem [#allocation7], %s220
        %p222 = pneg %p96
        %p223 = pneg %p93
        %p224 = pneg %p124
        %p225 = pneg %p121
        %s226 = smul.u32 2, %s24
        %p227 = scmp.lt.s32.totalorder %s23, 1
        %s228 = scalar_select %p227, %s23, 1
        %p229 = scmp.lt.s32.totalorder %s226, 1
        %s230 = scalar_select %p229, %s226, 1
        %s231 = smul.addr %s228, 2
        %s232 = sadd.s32 %s230, %s231
        %s233 = smul.addr %s232, 4
        %s234 = scalar_lea.vmem %s3, %s233
        %s235 = smul.u32 2, %s24
        %s236 = smul.u32 2, %s24
        %p237 = scmp.lt.s32.totalorder %s23, 1
        %s238 = scalar_select %p237, %s23, 1
        %p239 = scmp.lt.s32.totalorder %s236, 1
        %s240 = scalar_select %p239, %s236, 1
        %s241 = smul.addr %s238, 2
        %s242 = sadd.s32 %s240, %s241
        %s243 = smul.addr %s242, 4
        %s244 = scalar_lea.vmem %s3, %s243
        %s245 = smul.u32 2, %s24
        %v246 = vld [vmem:[%s206] sm:$0xff]
        %s247 = sld [smem:[#allocation5]]
        %s248 = sld [smem:[#allocation2]]
        %v249 = vstv %s248
        %v250 = vmul.f32 %v249, %v246
        %v251 = vstv %s247
        %v252 = vadd.f32 %v251, %v250
        %s253 = sld [smem:[#allocation2 + $0x1]]
        %v254 = vstv %s253
        %v255 = vmul.f32 %v254, %v246
        %v257 = vrot.slane %v255, 5
        %v258 = vrot.slane %v257, 4
        %v260 = vadd.f32 %v252, %v258
        %s261 = sld [smem:[#allocation2 + $0x2]]
        %v262 = vstv %s261
        %v263 = vmul.f32 %v262, %v246
        %v265 = vrot.slane %v263, 6
        %v266 = vrot.slane %v265, 4
        %v268 = vadd.f32 %v260, %v266
        %s269 = sld [smem:[#allocation2 + $0x3]]
        %v270 = vstv %s269
        %v271 = vmul.f32 %v270, %v246
        %v273 = vrot.slane %v271, 7
        %v274 = vrot.slane %v273, 4
        %v276 = vadd.f32 %v268, %v274
        %s277 = sld [smem:[#allocation5 + $0x1]]
        %s278 = sld [smem:[#allocation2 + $0x80]]
        %v279 = vstv %s278
        %v280 = vmul.f32 %v279, %v246
        %v281 = vstv %s277
        %v282 = vadd.f32 %v281, %v280
        %s283 = sld [smem:[#allocation2 + $0x81]]
        %v284 = vstv %s283
        %v285 = vmul.f32 %v284, %v246
        %v287 = vrot.slane %v285, 5
        %v288 = vrot.slane %v287, 4
        %v290 = vadd.f32 %v282, %v288
        %s291 = sld [smem:[#allocation2 + $0x82]]
        %v292 = vstv %s291
        %v293 = vmul.f32 %v292, %v246
        %v295 = vrot.slane %v293, 6
        %v296 = vrot.slane %v295, 4
        %v298 = vadd.f32 %v290, %v296
        %s299 = sld [smem:[#allocation2 + $0x83]]
        %v300 = vstv %s299
        %v301 = vmul.f32 %v300, %v246
        %v303 = vrot.slane %v301, 7
        %v304 = vrot.slane %v303, 4
        %v306 = vadd.f32 %v298, %v304
        %s307 = sld [smem:[#allocation5 + $0x2]]
        %s308 = sld [smem:[#allocation2 + $0x100]]
        %v309 = vstv %s308
        %v310 = vmul.f32 %v309, %v246
        %v311 = vstv %s307
        %v312 = vadd.f32 %v311, %v310
        %s313 = sld [smem:[#allocation2 + $0x101]]
        %v314 = vstv %s313
        %v315 = vmul.f32 %v314, %v246
        %v317 = vrot.slane %v315, 5
        %v318 = vrot.slane %v317, 4
        %v320 = vadd.f32 %v312, %v318
        %s321 = sld [smem:[#allocation2 + $0x102]]
        %v322 = vstv %s321
        %v323 = vmul.f32 %v322, %v246
        %v325 = vrot.slane %v323, 6
        %v326 = vrot.slane %v325, 4
        %v328 = vadd.f32 %v320, %v326
        %s329 = sld [smem:[#allocation2 + $0x103]]
        %v330 = vstv %s329
        %v331 = vmul.f32 %v330, %v246
        %v333 = vrot.slane %v331, 7
        %v334 = vrot.slane %v333, 4
        %v336 = vadd.f32 %v328, %v334
        %v338 = vperm.slane %v276, 0
        %v339 = vperm.slane %v276, 4
        %v343 = vperm.slane %v306, 0
        %v344 = vperm.slane %v306, 4
        %v348 = vperm.slane %v336, 0
        %v349 = vperm.slane %v336, 4
        %vm352 = vcmask 1040384
        %v353 = vsel %vm352, %v338, %v343
        %v354 = vsel %vm352, %v339, %v344
        %vm355 = vcmask 1041408
        %v356 = vsel %vm355, %v353, %v348
        %v357 = vsel %vm355, %v354, %v349
        %v360 = vrot.slane %v357, 4
        %vm361 = vcmask 1043456
        %v362 = vsel %vm361, %v356, %v360
        %364 = vst [vmem:[%s244] sm:$0x77] %v362
        %s365 = smul.u32 2, %s24
        %p366 = scmp.lt.s32.totalorder %s23, 1
        %s367 = scalar_select %p366, %s23, 1
        %p368 = scmp.lt.s32.totalorder %s365, 1
        %s369 = scalar_select %p368, %s365, 1
        %s370 = smul.addr %s367, 2
        %s371 = sadd.s32 %s369, %s370
        %s372 = smul.addr %s371, 4
        %s373 = scalar_lea.vmem %s3, %s372
        // Predicated region
        $region45: #{tpu_custom_call.1} parent=31 // pred_check
          %p374 = pneg %p121
        $region46: #{tpu_custom_call.1} parent=31 // pred_check_branch
          %376 = sbr.rel (%p374) target = $region48
        $region47: #{tpu_custom_call.1} parent=31 // pred_region
          %s377 = smul.u32 2, %s24
        $region48: #{tpu_custom_call.1} parent=31 // pred_fallthru
          _
      $region32: #{tpu_custom_call.1} parent=5 // pred_fallthru
        _
      %p378 = scmp.le.s32.totalorder 2, %s14
      // Predicated region
      $region49: #{tpu_custom_call.1} parent=5 // pred_check
        %p379 = pneg %p378
      $region50: #{tpu_custom_call.1} parent=5 // pred_check_branch
        %381 = sbr.rel (%p379) target = $region52
      $region51: #{tpu_custom_call.1} parent=5 // pred_region
        %s382 = ssub.s32 %s14, 2
        // Predicated region
        $region53: #{tpu_custom_call.1} parent=51 // pred_check
          %p383 = pneg %p127
        $region54: #{tpu_custom_call.1} parent=51 // pred_check_branch
          %385 = sbr.rel (%p383) target = $region56
        $region55: #{tpu_custom_call.1} parent=51 // pred_region
          %s386 = smul.u32 2, %s26
          %p387 = scmp.lt.s32.totalorder %s25, 1
          %s388 = scalar_select %p387, %s25, 1
          %p389 = scmp.lt.s32.totalorder %s386, 1
          %s390 = scalar_select %p389, %s386, 1
          %s391 = smul.addr %s388, 2
          %s392 = sadd.s32 %s390, %s391
          %s393 = smul.addr %s392, 4
          %s394 = scalar_lea.vmem %s3, %s393
        $region56: #{tpu_custom_call.1} parent=51 // pred_fallthru
          _
      $region52: #{tpu_custom_call.1} parent=5 // pred_fallthru
        _
    $region6: #{tpu_custom_call.1} parent=1 // loop_footer
      %s18 = sadd.s32 1, %s14
    $region7: #{tpu_custom_call.1} parent=1 // loop_footer_branch
      %13 = sbr.rel target = $region3
    $region8: #{tpu_custom_call.1} parent=1 // loop_exit
      _
    %395 = vsyncpa [#allocation3], 1
    %s396 = scalar_lea.sflag [#allocation3], 1
    %397 = vsyncpa %s396, 1
    %398 = vsyncpa [#allocation4], 1
    %s399 = scalar_lea.sflag [#allocation4], 1
    %400 = vsyncpa %s399, 1
    %401 = vsyncpa [#allocation6], 1

</llo_original>
